<compile_context>
chip_gen: v7x
topology: tpu7x:2x2x1
jax: 0.10.0
libtpu: 0.0.40
codegen_flags: <defaults>
</compile_context>

<pallas_src>
import functools

import jax
import jax.numpy as jnp
from jax import lax
from jax.experimental import pallas as pl
from jax.experimental.pallas import tpu as pltpu

ALPHA = 1.0   # module default alpha=1
GAMMA = 2.0   # module default gamma=2

_MiB = 1024 * 1024


def _round_up(x, m):
    return ((x + m - 1) // m) * m


def _vmem_capacity_bytes():
    """Physical VMEM per core; conservative 64 MiB fallback if the query fails."""
    try:
        return int(pltpu.get_tpu_info().vmem_capacity_bytes)
    except Exception:
        return 64 * _MiB


def focal_loss_kernel(logits_ref, targets_ref, out_ref, *, n_total, tile_n):
    # logits_ref: [T, C] (input dtype, VMEM), targets_ref: [T, 1] int32 (VMEM)
    # out_ref:    [1, 1, 128] float32 -- per-tile partial sum (lane-dense store)
    i = pl.program_id(0)

    x = logits_ref[...]                                  # [T, C], input dtype
    t = targets_ref[...]                                 # [T, 1] int32
    tn, c = x.shape

    # mask for padded tail rows of the last tile
    row = lax.broadcasted_iota(jnp.int32, (tn, 1), 0)    # [T, 1]
    valid = (i * tile_n + row) < n_total                 # [T, 1] bool

    # numerically stable log-softmax denominator; the row-max stays in the
    # input dtype (exact), only the exp/sum/log path is f32 -> no full f32
    # copy of the tile is kept live alongside the input block.
    m = jnp.max(x, axis=-1, keepdims=True)               # [T, 1] input dtype
    shifted = x.astype(jnp.float32) - m.astype(jnp.float32)
    lse = m.astype(jnp.float32) + jnp.log(
        jnp.sum(jnp.exp(shifted), axis=-1, keepdims=True))

    # gather target-class logit via one-hot select (no dynamic gather on TPU);
    # select + sum stay in the input dtype (exact: one non-zero per row).
    class_ids = lax.broadcasted_iota(jnp.int32, (tn, c), 1)
    onehot = class_ids == t
    logit_t = jnp.sum(jnp.where(onehot, x, jnp.array(0, dtype=x.dtype)),
                      axis=-1, keepdims=True).astype(jnp.float32)

    logpt = logit_t - lse                                 # [T, 1] (= -CE per sample)
    pt = jnp.exp(logpt)
    one_minus_pt = 1.0 - pt
    if GAMMA == 2.0:
        focal_w = one_minus_pt * one_minus_pt             # explicit square: VPU only
    elif float(GAMMA).is_integer() and GAMMA >= 0:
        focal_w = one_minus_pt ** int(GAMMA)
    else:
        focal_w = jnp.power(one_minus_pt, jnp.float32(GAMMA))
    loss = -ALPHA * focal_w * logpt                       # [T, 1]

    # zero out padded rows, reduce this tile
    loss = jnp.where(valid, loss, 0.0)
    partial = jnp.sum(loss)

    # one full lane-dense (1,1,128) store per tile -> unmasked vst
    out_ref[...] = jnp.full(out_ref.shape, partial, dtype=jnp.float32)


def _pick_tile_n(n, c, itemsize, step_budget_bytes):
    """Row tile sized purely by a per-step VMEM byte budget (no flat row cap).

    per-row cost = double-buffered logits block (2*itemsize) + ~3 full-width
    f32/int32 in-kernel intermediates (exp temp, one-hot iota, selects) +
    double-buffered targets block.
    """
    sub = 16 if itemsize == 2 else 8            # bf16 packs 2 rows per sublane
    c_pad = max(128, _round_up(c, 128))
    per_row = c_pad * (2 * itemsize + 12) + 2 * 128 * 4
    t = int(step_budget_bytes) // per_row
    t = max(sub, (t // sub) * sub)
    # keep >= 2 grid steps when possible (v7x megacore; harmless on v5e/v6e)
    half = _round_up(max(1, pl.cdiv(n, 2)), sub)
    t = min(t, max(sub, half))
    return t


def focal_loss(logits, targets, tile_n=None):
    """logits: [N, C] float (f32 or bf16), targets: [N] int -> scalar f32 mean focal loss."""
    n, c = logits.shape
    itemsize = jnp.dtype(logits.dtype).itemsize
    sub = 16 if itemsize == 2 else 8

    # generation-aware budgets: v7x (64 MiB VMEM) vs v5e/v6e (128 MiB VMEM)
    vmem_cap = _vmem_capacity_bytes()
    if vmem_cap <= 64 * _MiB:
        step_budget, limit_cap = 40 * _MiB, 48 * _MiB
    else:
        step_budget, limit_cap = 80 * _MiB, 96 * _MiB

    if tile_n is None:
        tile_n = _pick_tile_n(n, c, itemsize, step_budget)
    tile_n = max(sub, (int(tile_n) // sub) * sub)
    num_tiles = pl.cdiv(n, tile_n)

    t2 = targets.astype(jnp.int32).reshape(n, 1)

    # scoped-VMEM demand: double-buffered input blocks + f32/int32 in-kernel
    # intermediates + output blocks, with 25% headroom, capped per generation.
    c_pad = max(128, _round_up(c, 128))
    vmem_need = (2 * tile_n * c_pad * itemsize     # logits blocks (x2 buffers)
                 + 3 * tile_n * c_pad * 4          # exp / iota / select temps
                 + 2 * tile_n * 128 * 4            # targets blocks (x2 buffers)
                 + 2 * 8 * 128 * 4)                # output blocks
    vmem_limit = int(min(max(int(vmem_need * 1.25), 32 * _MiB), limit_cap))

    kernel = functools.partial(focal_loss_kernel, n_total=n, tile_n=tile_n)

    partials = pl.pallas_call(
        kernel,
        out_shape=jax.ShapeDtypeStruct((num_tiles, 1, 128), jnp.float32),
        grid=(num_tiles,),
        in_specs=[
            pl.BlockSpec((tile_n, c), lambda i: (i, 0)),
            pl.BlockSpec((tile_n, 1), lambda i: (i, 0)),
        ],
        out_specs=pl.BlockSpec((1, 1, 128), lambda i: (i, 0, 0)),
        compiler_params=pltpu.CompilerParams(
            dimension_semantics=("parallel",),
            vmem_limit_bytes=vmem_limit,
        ),
        cost_estimate=pl.CostEstimate(
            flops=int(6 * n * c),
            transcendentals=int(n * c + 2 * n),
            bytes_accessed=int(n * c * itemsize + n * 4 + num_tiles * 128 * 4),
        ),
    )(logits, t2)

    # finalize: sum of per-tile partials / true N  (reduction='mean')
    return jnp.sum(partials[:, 0, 0]) / jnp.float32(n)


def focal_loss_ref(logits, targets):
    """Pure-JAX reference matching the PyTorch module semantics."""
    logp = jax.nn.log_softmax(logits.astype(jnp.float32), axis=-1)
    logpt = jnp.take_along_axis(logp, targets[:, None].astype(jnp.int32), axis=-1)[:, 0]
    pt = jnp.exp(logpt)
    loss = -ALPHA * (1.0 - pt) ** GAMMA * logpt
    return jnp.mean(loss)


if __name__ == "__main__":
    key = jax.random.PRNGKey(0)
    k1, k2, k3, k4 = jax.random.split(key, 4)

    # Case 1: small f32 batch, N not a multiple of 8 -> exercises tail masking
    # and the auto (byte-budget) tile picker.
    N1, C1 = 10, 16
    logits1 = jax.random.normal(k1, (N1, C1), dtype=jnp.float32)
    targets1 = jax.random.randint(k2, (N1,), 0, C1, dtype=jnp.int32)
    out1 = jax.block_until_ready(focal_loss(logits1, targets1))
    ref1 = focal_loss_ref(logits1, targets1)
    assert jnp.allclose(out1, ref1, rtol=1e-5, atol=1e-5), (out1, ref1)

    # Case 2: bf16 logits, multiple tiles (forced tile_n=128) + ragged tail.
    N2, C2 = 300, 128
    logits2 = jax.random.normal(k3, (N2, C2), dtype=jnp.float32).astype(jnp.bfloat16)
    targets2 = jax.random.randint(k4, (N2,), 0, C2, dtype=jnp.int32)
    out2 = jax.block_until_ready(focal_loss(logits2, targets2, tile_n=128))
    ref2 = focal_loss_ref(logits2, targets2)
    assert jnp.allclose(out2, ref2, rtol=1e-4, atol=1e-4), (out2, ref2)

    print("KERNEL_OK")
</pallas_src>

<mosaic_0001>
module attributes {stable_mosaic.version = 11 : i64} {
  func.func @focal_loss_kernel(%arg0: i32, %arg1: memref<8x16xf32, #tpu.memory_space<vmem>>, %arg2: memref<8x1xi32, #tpu.memory_space<vmem>>, %arg3: memref<1x1x128xf32, #tpu.memory_space<vmem>>) attributes {dimension_semantics = [#tpu.dimension_semantics<parallel>], iteration_bounds = array<i64: 2>, scalar_prefetch = 0 : i64, scratch_operands = 0 : i64, tpu.core_type = #tpu.core_type<tc>, window_params = [{transform_indices = @transform_0, window_bounds = array<i64: 8, 16>}, {transform_indices = @transform_1, window_bounds = array<i64: 8, 1>}, {transform_indices = @transform_2, window_bounds = array<i64: 1, 1, 128>}]} {
    %c0 = arith.constant 0 : index
    %c0_0 = arith.constant 0 : index
    %0 = vector.load %arg1[%c0, %c0_0] : memref<8x16xf32, #tpu.memory_space<vmem>>, vector<8x16xf32>
    %c0_1 = arith.constant 0 : index
    %c0_2 = arith.constant 0 : index
    %1 = vector.load %arg2[%c0_1, %c0_2] : memref<8x1xi32, #tpu.memory_space<vmem>>, vector<8x1xi32>
    %2 = tpu.iota {dimensions = array<i32: 0>} : vector<8x1xi32>
    %c8_i32 = arith.constant 8 : i32
    %3 = arith.muli %arg0, %c8_i32 : i32
    %4 = vector.broadcast %3 : i32 to vector<8x1xi32>
    %5 = arith.addi %4, %2 : vector<8x1xi32>
    %c10_i32 = arith.constant 10 : i32
    %6 = vector.broadcast %c10_i32 : i32 to vector<8x1xi32>
    %7 = arith.cmpi slt, %5, %6 : vector<8x1xi32>
    %cst = arith.constant dense<0xFF800000> : vector<8xf32>
    %8 = vector.multi_reduction <maximumf>, %0, %cst [1] : vector<8x16xf32> to vector<8xf32>
    %9 = vector.shape_cast %8 : vector<8xf32> to vector<8x1xf32>
    %10 = vector.broadcast %9 : vector<8x1xf32> to vector<8x16xf32>
    %11 = arith.subf %0, %10 : vector<8x16xf32>
    %12 = math.exp %11 : vector<8x16xf32>
    %cst_3 = arith.constant dense<0.000000e+00> : vector<8xf32>
    %13 = vector.multi_reduction <add>, %12, %cst_3 [1] : vector<8x16xf32> to vector<8xf32>
    %14 = vector.shape_cast %13 : vector<8xf32> to vector<8x1xf32>
    %15 = math.log %14 : vector<8x1xf32>
    %16 = arith.addf %9, %15 : vector<8x1xf32>
    %17 = tpu.iota {dimensions = array<i32: 1>} : vector<8x16xi32>
    %18 = vector.broadcast %1 : vector<8x1xi32> to vector<8x16xi32>
    %19 = arith.cmpi eq, %17, %18 : vector<8x16xi32>
    %cst_4 = arith.constant 0.000000e+00 : f32
    %20 = vector.broadcast %cst_4 : f32 to vector<8x16xf32>
    %21 = arith.select %19, %0, %20 : vector<8x16xi1>, vector<8x16xf32>
    %cst_5 = arith.constant dense<0.000000e+00> : vector<8xf32>
    %22 = vector.multi_reduction <add>, %21, %cst_5 [1] : vector<8x16xf32> to vector<8xf32>
    %23 = vector.shape_cast %22 : vector<8xf32> to vector<8x1xf32>
    %24 = arith.subf %23, %16 : vector<8x1xf32>
    %25 = math.exp %24 : vector<8x1xf32>
    %cst_6 = arith.constant 1.000000e+00 : f32
    %26 = vector.broadcast %cst_6 : f32 to vector<8x1xf32>
    %27 = arith.subf %26, %25 : vector<8x1xf32>
    %28 = arith.mulf %27, %27 : vector<8x1xf32>
    %cst_7 = arith.constant -1.000000e+00 : f32
    %29 = vector.broadcast %cst_7 : f32 to vector<8x1xf32>
    %30 = arith.mulf %29, %28 : vector<8x1xf32>
    %31 = arith.mulf %30, %24 : vector<8x1xf32>
    %cst_8 = arith.constant 0.000000e+00 : f32
    %32 = vector.broadcast %cst_8 : f32 to vector<8x1xf32>
    %33 = arith.select %7, %31, %32 : vector<8x1xi1>, vector<8x1xf32>
    %34 = vector.shape_cast %33 : vector<8x1xf32> to vector<1x8x1xf32>
    %cst_9 = arith.constant dense<0.000000e+00> : vector<1xf32>
    %35 = vector.multi_reduction <add>, %34, %cst_9 [1, 2] : vector<1x8x1xf32> to vector<1xf32>
    %36 = vector.shape_cast %35 : vector<1xf32> to vector<1x1x1xf32>
    %37 = vector.extract %36[0, 0, 0] : f32 from vector<1x1x1xf32>
    %38 = vector.broadcast %37 : f32 to vector<1x1x128xf32>
    %c0_10 = arith.constant 0 : index
    %c0_11 = arith.constant 0 : index
    %c0_12 = arith.constant 0 : index
    %39 = vector.load %arg3[%c0_10, %c0_11, %c0_12] : memref<1x1x128xf32, #tpu.memory_space<vmem>>, vector<1x1x128xf32>
    tpu.vector_store %arg3[%c0_10, %c0_11, %c0_12], %38 {strides = array<i32>} : memref<1x1x128xf32, #tpu.memory_space<vmem>>, vector<1x1x128xf32>,
    return
  }
  func.func @transform_0(%arg0: i32) -> (i32, i32) {
    %c0_i32 = arith.constant 0 : i32
    %c0_i32_0 = arith.constant 0 : i32
    return %arg0, %c0_i32 : i32, i32
  }
  func.func @transform_1(%arg0: i32) -> (i32, i32) {
    %c0_i32 = arith.constant 0 : i32
    %c0_i32_0 = arith.constant 0 : i32
    return %arg0, %c0_i32 : i32, i32
  }
  func.func @transform_2(%arg0: i32) -> (i32, i32, i32) {
    %c0_i32 = arith.constant 0 : i32
    %c0_i32_0 = arith.constant 0 : i32
    %c0_i32_1 = arith.constant 0 : i32
    return %arg0, %c0_i32, %c0_i32_0 : i32, i32, i32
  }
}

</mosaic_0001>

<llo_original>
// kernel: tpu_custom_call.1
$region0: #{tpu_custom_call.1}
  #allocation0 [shape = 'u32[]', space=smem, size = 0x4, offset = 0x4, fixed_abs, tag = 'smem constant byte address 0x4 - core index']
  #allocation1 [shape = 'u32[144,128]{1,0:T(1,128)}', space=vmem, size = 0x12000, scoped, tag = 'internal scratch']
  %s0 = inlined_call_operand.vmem [shape: f32[10,16], index: 0, kind: input, shape index: {}]
  %s1 = inlined_call_operand.vmem [shape: s32[10,1], index: 1, kind: input, shape index: {}]
  %s2 = inlined_call_operand.hbm [shape: f32[2,1,128], index: 2, kind: output, shape index: {}]
  %s3 = sld [smem:[#allocation0]]
  $region41: #{tpu_custom_call.1} parent=0
    _
  %s5 = ssub.s32 1, %s3
  %s6 = scalar_select 0, %s5, %s3
  $region1: #{tpu_custom_call.1} parent=0
    #allocation2 [shape = 'u8[1024]{0}', space=vmem, size = 0x400, scoped, tag = 'output window, operand 0']
    #allocation3 [shape = 's32[2]{0}', space=sflag, size = 0x8, scoped, tag = 'scoped memory for tpu_custom_call.1']
    %7 = vsyncpa [#allocation3], 0
    %s8 = scalar_lea.sflag [#allocation3], 1
    %9 = vsyncpa %s8, 0
    loop: start=0, step=1, limit=4
    $region2: #{tpu_custom_call.1} parent=1 // loop_pre_header
      _
    $region3: #{tpu_custom_call.1} parent=1 // loop_header
      %s11 = sphi 0, %s15
      %p12 = scmp.ge.s32.totalorder %s11, 4
      %s21 = sphi 0, %s23
      %s24 = sphi 0, %s21
      %s25 = sphi 0, %s24
      %s41 = sphi 0, %s25
      %s47 = sphi 0, %s49
      %s50 = sphi 0, %s47
      %s51 = sphi 0, %s50
      %s67 = sphi 0, %s51
      %s73 = sphi 0, %s75
      %s76 = sphi 0, %s73
      %s77 = sphi 0, %s76
      %s93 = sphi 0, %s77
    $region4: #{tpu_custom_call.1} parent=1 // loop_header_branch
      %14 = sbr.rel (%p12) target = $region8
    $region5: #{tpu_custom_call.1} parent=1 // loop_body
      %s16 = ssub.s32 %s11, 1
      %s17 = ssub.s32 %s11, 2
      %s18 = sadd.s32 %s11, 1
      %s19 = ssub.s32 %s11, %s18
      %p20 = scmp.eq.s32.totalorder %s19, 0
      %s22 = sadd.s32 %s21, 1
      %s23 = scalar_select %p20, %s21, %s22
      %p26 = pneg %p20
      %p27 = scmp.eq.s32.totalorder %s11, 1
      %p28 = por %p26, %p27
      %p29 = scmp.ne.s32.totalorder %s21, %s24
      %p30 = scmp.eq.s32.totalorder %s11, 0
      %p31 = por %p29, %p30
      %p32 = scmp.ne.s32.totalorder %s21, %s24
      %p33 = scmp.eq.s32.totalorder %s16, 1
      %p34 = por %p32, %p33
      %p35 = scmp.ne.s32.totalorder %s24, %s25
      %p36 = scmp.eq.s32.totalorder %s16, 0
      %p37 = por %p35, %p36
      %p38 = scmp.ne.s32.totalorder %s24, %s25
      %p39 = scmp.eq.s32.totalorder %s17, 1
      %p40 = por %p38, %p39
      %p42 = scmp.ne.s32.totalorder %s25, %s41
      %p43 = scmp.eq.s32.totalorder %s17, 0
      %p44 = por %p42, %p43
      %s45 = ssub.s32 %s11, %s18
      %p46 = scmp.eq.s32.totalorder %s45, 0
      %s48 = sadd.s32 %s47, 1
      %s49 = scalar_select %p46, %s47, %s48
      %p52 = pneg %p46
      %p53 = scmp.eq.s32.totalorder %s11, 1
      %p54 = por %p52, %p53
      %p55 = scmp.ne.s32.totalorder %s47, %s50
      %p56 = scmp.eq.s32.totalorder %s11, 0
      %p57 = por %p55, %p56
      %p58 = scmp.ne.s32.totalorder %s47, %s50
      %p59 = scmp.eq.s32.totalorder %s16, 1
      %p60 = por %p58, %p59
      %p61 = scmp.ne.s32.totalorder %s50, %s51
      %p62 = scmp.eq.s32.totalorder %s16, 0
      %p63 = por %p61, %p62
      %p64 = scmp.ne.s32.totalorder %s50, %s51
      %p65 = scmp.eq.s32.totalorder %s17, 1
      %p66 = por %p64, %p65
      %p68 = scmp.ne.s32.totalorder %s51, %s67
      %p69 = scmp.eq.s32.totalorder %s17, 0
      %p70 = por %p68, %p69
      %s71 = ssub.s32 %s11, %s18
      %p72 = scmp.eq.s32.totalorder %s71, 0
      %s74 = sadd.s32 %s73, 1
      %s75 = scalar_select %p72, %s73, %s74
      %p78 = pneg %p72
      %p79 = scmp.eq.s32.totalorder %s11, 1
      %p80 = por %p78, %p79
      %p81 = scmp.ne.s32.totalorder %s73, %s76
      %p82 = scmp.eq.s32.totalorder %s11, 0
      %p83 = por %p81, %p82
      %p84 = scmp.ne.s32.totalorder %s73, %s76
      %p85 = scmp.eq.s32.totalorder %s16, 1
      %p86 = por %p84, %p85
      %p87 = scmp.ne.s32.totalorder %s76, %s77
      %p88 = scmp.eq.s32.totalorder %s16, 0
      %p89 = por %p87, %p88
      %p90 = scmp.ne.s32.totalorder %s76, %s77
      %p91 = scmp.eq.s32.totalorder %s17, 1
      %p92 = por %p90, %p91
      %p94 = scmp.ne.s32.totalorder %s77, %s93
      %p95 = scmp.eq.s32.totalorder %s17, 0
      %p96 = por %p94, %p95
      %p97 = scmp.le.s32.totalorder 1, %s11
      %p98 = scmp.lt.s32.totalorder %s11, 3
      %p99 = pnand %p97, %p98
      %p100 = pneg %p99
      // Predicated region
      $region9: #{tpu_custom_call.1} parent=5 // pred_check
        _
      $region10: #{tpu_custom_call.1} parent=5 // pred_check_branch
        %102 = sbr.rel (%p99) target = $region12
      $region11: #{tpu_custom_call.1} parent=5 // pred_region
        %s103 = ssub.s32 %s11, 1
      $region12: #{tpu_custom_call.1} parent=5 // pred_fallthru
        _
      %p104 = scmp.lt.s32.totalorder %s11, 2
      // Predicated region
      $region13: #{tpu_custom_call.1} parent=5 // pred_check
        %p105 = pneg %p104
      $region14: #{tpu_custom_call.1} parent=5 // pred_check_branch
        %107 = sbr.rel (%p105) target = $region16
      $region15: #{tpu_custom_call.1} parent=5 // pred_region
        // Predicated region
        $region17: #{tpu_custom_call.1} parent=15 // pred_check
          %p108 = pneg %p31
        $region18: #{tpu_custom_call.1} parent=15 // pred_check_branch
          %110 = sbr.rel (%p108) target = $region20
        $region19: #{tpu_custom_call.1} parent=15 // pred_region
          %p111 = scmp.lt.s32.totalorder %s11, 1
          %s112 = scalar_select %p111, %s11, 1
          %s113 = smul.addr %s112, 8
          %s114 = scalar_lea.vmem %s0, %s113
        $region20: #{tpu_custom_call.1} parent=15 // pred_fallthru
          _
        // Predicated region
        $region21: #{tpu_custom_call.1} parent=15 // pred_check
          %p115 = pneg %p57
        $region22: #{tpu_custom_call.1} parent=15 // pred_check_branch
          %117 = sbr.rel (%p115) target = $region24
        $region23: #{tpu_custom_call.1} parent=15 // pred_region
          %p118 = scmp.lt.s32.totalorder %s11, 1
          %s119 = scalar_select %p118, %s11, 1
          %s120 = smul.addr %s119, 8
          %s121 = scalar_lea.vmem %s1, %s120
        $region24: #{tpu_custom_call.1} parent=15 // pred_fallthru
          _
      $region16: #{tpu_custom_call.1} parent=5 // pred_fallthru
        _
      %p122 = scmp.le.s32.totalorder 1, %s11
      %p123 = scmp.lt.s32.totalorder %s11, 3
      %p124 = pnand %p122, %p123
      %p125 = pneg %p124
      // Predicated region
      $region25: #{tpu_custom_call.1} parent=5 // pred_check
        _
      $region26: #{tpu_custom_call.1} parent=5 // pred_check_branch
        %127 = sbr.rel (%p124) target = $region28
      $region27: #{tpu_custom_call.1} parent=5 // pred_region
        %s128 = ssub.s32 %s11, 1
        %p129 = scmp.lt.s32.totalorder %s16, 1
        %s130 = scalar_select %p129, %s16, 1
        %s131 = smul.addr %s130, 8
        %s132 = scalar_lea.vmem %s0, %s131
        %p133 = pneg %p37
        %p134 = pneg %p34
        %p135 = scmp.lt.s32.totalorder %s16, 1
        %s136 = scalar_select %p135, %s16, 1
        %s137 = smul.addr %s136, 8
        %s138 = scalar_lea.vmem %s1, %s137
        %p139 = pneg %p63
        %p140 = pneg %p60
        %p141 = pneg %p89
        %p142 = pneg %p86
        %s143 = sand.u32 %s76, 1
        %s144 = scalar_lea.sflag [#allocation3], %s143
        %s145 = sand.u32 %s76, 1
        %s146 = scalar_lea.vmem [#allocation2], %s145
        %p147 = scmp.lt.s32.totalorder %s16, 1
        %s148 = scalar_select %p147, %s16, 1
        %s149 = smul.addr %s148, 8
        %s150 = scalar_lea.vmem %s0, %s149
        %p151 = scmp.lt.s32.totalorder %s16, 1
        %s152 = scalar_select %p151, %s16, 1
        %s153 = smul.addr %s152, 8
        %s154 = scalar_lea.vmem %s1, %s153
        %v155 = vld [vmem:[%s150] sm:$0xff]
        %v156 = vld [vmem:[%s154] sm:$0xff]
        %v157 = vlaneseq
        %v158 = vshrl.u32 %v157, 7
        %s159 = smul.u32 %s16, 8
        %v160 = vstv %s159
        %v161 = vadd.s32 %v160, %v158
        %vm162 = vcmp.lt.s32.totalorder %v161, 10
        %vm163 = vcmask 130048
        %v164 = vsel %vm163, %v155, -inf
        %165 = vmax.xlane.f32.xlu0 %v164
        %v166 = vpop.xlane.xlu0 %165
        %v167 = vsub.f32 %v155, %v166
        %v168 = vmul.f32 %v167, 1.442695
        %v169 = vpow.pop %v168
        %v170 = vsel %vm163, %v169, 0.0
        %171 = vadd.xlane.f32.xlu0 %v170
        %v172 = vpop.xlane.xlu0 %171
        %v173 = vlog2.pop %v172
        %v174 = vmul.f32 %v173, 0.6931472
        %v175 = vadd.f32 %v166, %v174
        %v176 = vlaneseq
        %v177 = vand.u32 %v176, 127
        %178 = vset.pattern.permute.xlu0 0
        %179 = vperm.xlu0 %178, %v156
        %v180 = vpop.permute.xlu0 %179
        %vm181 = vcmp.eq.s32.totalorder %v177, %v180
        %v182 = vsel %vm181, %v155, 0.0
        %v183 = vsel %vm163, %v182, 0.0
        %184 = vadd.xlane.f32.xlu0 %v183
        %v185 = vpop.xlane.xlu0 %184
        %v186 = vsub.f32 %v185, %v175
        %v187 = vmul.f32 %v186, 1.442695
        %v188 = vpow.pop %v187
        %v189 = vsub.f32 1.0, %v188
        %v190 = vmul.f32 %v189, %v189
        %v191 = vmul.f32 %v190, -1.0
        %v192 = vmul.f32 %v191, %v186
        %v193 = vsel %vm162, %v192, 0.0
        %vm194 = vcmask 7168
        %v195 = vsel %vm194, %v193, 0.0
        %196 = vadd.xlane.f32.xlu0 %v195
        %v197 = vpop.xlane.xlu0 %196
        %v198 = vrot.slane %v197, 4
        %v199 = vadd.f32 %v197, %v198
        %v200 = vrot.slane %v199, 2
        %v201 = vadd.f32 %v199, %v200
        %v202 = vrot.slane %v201, 1
        %v203 = vadd.f32 %v201, %v202
        %s204 = vtos %v203
        %v205 = vstv %s204
        %206 = vst [vmem:[%s146] sm:$0x1] %v205
        %s207 = sand.u32 %s76, 1
        %s208 = scalar_lea.sflag [#allocation3], %s207
        %s209 = sand.u32 %s76, 1
        %s210 = scalar_lea.vmem [#allocation2], %s209
        // Predicated region
        $region29: #{tpu_custom_call.1} parent=27 // pred_check
          %p211 = pneg %p86
        $region30: #{tpu_custom_call.1} parent=27 // pred_check_branch
          %213 = sbr.rel (%p211) target = $region32
        $region31: #{tpu_custom_call.1} parent=27 // pred_region
          %s215 = ssub.s32 16, 16
          %216 = vsyncadd %s208, %s215
          %s217 = smul.addr %s16, 16
          %s218 = scalar_lea.hbm %s2, %s217
          %s220 = sshll.u32 %s210, 4
          %s221 = int_to_ptr.vmem [resolvable:$true] %s220
          %223 = dma.vmem_to_hbm [thread:$0]  %s221, 16, %s218, %s208
        $region32: #{tpu_custom_call.1} parent=27 // pred_fallthru
          _
      $region28: #{tpu_custom_call.1} parent=5 // pred_fallthru
        _
      %p224 = scmp.le.s32.totalorder 2, %s11
      // Predicated region
      $region33: #{tpu_custom_call.1} parent=5 // pred_check
        %p225 = pneg %p224
      $region34: #{tpu_custom_call.1} parent=5 // pred_check_branch
        %227 = sbr.rel (%p225) target = $region36
      $region35: #{tpu_custom_call.1} parent=5 // pred_region
        %s228 = ssub.s32 %s11, 2
        // Predicated region
        $region37: #{tpu_custom_call.1} parent=35 // pred_check
          %p229 = pneg %p92
        $region38: #{tpu_custom_call.1} parent=35 // pred_check_branch
          %231 = sbr.rel (%p229) target = $region40
        $region39: #{tpu_custom_call.1} parent=35 // pred_region
          %s232 = sand.u32 %s77, 1
          %s233 = scalar_lea.sflag [#allocation3], %s232
          %s234 = sand.u32 %s77, 1
          %s235 = scalar_lea.vmem [#allocation2], %s234
          %236 = dma.done %s233, 16
        $region40: #{tpu_custom_call.1} parent=35 // pred_fallthru
          _
      $region36: #{tpu_custom_call.1} parent=5 // pred_fallthru
        _
    $region6: #{tpu_custom_call.1} parent=1 // loop_footer
      %s15 = sadd.s32 1, %s11
    $region7: #{tpu_custom_call.1} parent=1 // loop_footer_branch
      %10 = sbr.rel target = $region3
    $region8: #{tpu_custom_call.1} parent=1 // loop_exit
      _
    %237 = vsyncpa [#allocation3], 1
    %s238 = scalar_lea.sflag [#allocation3], 1
    %239 = vsyncpa %s238, 1

</llo_original>
